<compile_context>
chip_gen: v7x
topology: tpu7x:2x2x1
jax: 0.10.0
libtpu: 0.0.40
codegen_flags: <defaults>
</compile_context>

<pallas_src>
import jax
import jax.numpy as jnp
from jax.experimental import pallas as pl
from jax.experimental.pallas import tpu as pltpu


def _round_up(n, m):
    return ((n + m - 1) // m) * m


def _sigmoid(z):
    # sigmoid(z) == 0.5 * (tanh(z / 2) + 1): one EUP transcendental per element
    # instead of exp + reciprocal; the mul/add glue lands on the 4-slot VPU,
    # which has slack. Exact, so it matches jax.nn.sigmoid to ~1e-7.
    return 0.5 * (jnp.tanh(0.5 * z) + 1.0)


def _fnn_kernel(x_ref, w1_ref, b1_ref, w2_ref, b2_ref, w3_ref, b3_ref, o_ref):
    """One batch tile of the 3-layer MLP, feature-major (batch on lanes).

    x:  (4, TM)           batch on the 128-lane axis
    w1: (HP1, 4)    b1: (HP1, 1)
    w2: (HP2, HP1)  b2: (HP2, 1)
    w3: (1, HP2)    b3: (1, 1)
    out: (1, TM)          lane-dense output tile

    Weights/biases use constant index_maps, so they stay VMEM-resident across
    grid steps; only the x / out tiles stream through the pipeline. Hidden
    dims are padded to x8 only (sublane granularity) and all three layers run
    on the MXU, leaving EUP (tanh) as the only hot unit at the minimum
    possible element count.
    """
    x = x_ref[...]                                                      # (4, TM)

    # Layer 1: (HP1, 4) @ (4, TM) on the MXU (tiny K padded internally).
    z1 = jnp.dot(w1_ref[...], x, preferred_element_type=jnp.float32) + b1_ref[...]
    h1 = _sigmoid(z1)                                                   # (HP1, TM)

    # Layer 2: (HP2, HP1) @ (HP1, TM), f32 accumulation.
    z2 = jnp.dot(w2_ref[...], h1, preferred_element_type=jnp.float32) + b2_ref[...]
    h2 = _sigmoid(z2)                                                   # (HP2, TM)

    # Layer 3: (1, HP2) @ (HP2, TM) -> (1, TM).
    out = jnp.dot(w3_ref[...], h2, preferred_element_type=jnp.float32) + b3_ref[...]
    o_ref[...] = out.astype(o_ref.dtype)


def init_params(key, hn1, hn2, num_inputs=4, num_outputs=1, dtype=jnp.float32):
    """nn.Linear-style init; weights stored PyTorch-style (out_features, in_features)."""
    ks = jax.random.split(key, 6)

    def lin(kw, kb, fan_in, fan_out):
        bound = 1.0 / jnp.sqrt(jnp.asarray(fan_in, dtype))
        w = jax.random.uniform(kw, (fan_out, fan_in), dtype, -bound, bound)
        b = jax.random.uniform(kb, (fan_out,), dtype, -bound, bound)
        return w, b

    w1, b1 = lin(ks[0], ks[1], num_inputs, hn1)
    w2, b2 = lin(ks[2], ks[3], hn1, hn2)
    w3, b3 = lin(ks[4], ks[5], hn2, num_outputs)
    return (w1, b1, w2, b2, w3, b3)


def prepare_params(params, num_inputs=4):
    """One-time prep: zero-pad hidden dims to a multiple of 8 (sublane axis only;
    hn=32 needs no padding). Numerically exact: padded W1/b1 rows are 0 ->
    sigmoid(0)=0.5 sublanes are killed by zero W2/W3 columns. Biases become
    column vectors that broadcast over the lane (batch) axis."""
    w1, b1, w2, b2, w3, b3 = params
    hn1, hn2 = w1.shape[0], w2.shape[0]
    hp1, hp2 = _round_up(hn1, 8), _round_up(hn2, 8)
    f32 = jnp.float32
    w1p = jnp.zeros((hp1, num_inputs), f32).at[:hn1, :].set(w1.astype(f32))
    b1p = jnp.zeros((hp1, 1), f32).at[:hn1, 0].set(b1.astype(f32))
    w2p = jnp.zeros((hp2, hp1), f32).at[:hn2, :hn1].set(w2.astype(f32))
    b2p = jnp.zeros((hp2, 1), f32).at[:hn2, 0].set(b2.astype(f32))
    w3p = jnp.zeros((1, hp2), f32).at[:, :hn2].set(w3.astype(f32))
    b3p = b3.reshape(1, 1).astype(f32)
    return (w1p, b1p, w2p, b2p, w3p, b3p)


def _pick_tile(batch, *, max_tile=2048, min_tile=128, target_steps=2):
    """Adaptive batch-tile: no wasted lanes for small batches, >=target_steps
    grid steps for large batches (v7x megacore), capped to amortize per-step
    overhead while staying well inside the 32 MiB scoped VMEM budget."""
    b_aligned = _round_up(max(int(batch), 1), min_tile)
    tm = _round_up(pl.cdiv(b_aligned, target_steps), min_tile)
    return max(min_tile, min(max_tile, tm))


def fnn_forward(x, prepared_params, *, tm=None):
    """x: (B, 4) row-major like the PyTorch module; returns (B, 1)."""
    w1p, b1p, w2p, b2p, w3p, b3p = prepared_params
    B, F = x.shape
    hp1 = w1p.shape[0]
    hp2 = w2p.shape[0]

    if tm is None:
        tm = _pick_tile(B)
    b_pad = _round_up(max(B, tm), tm)

    # Feature-major, lane-dense layout: batch on the 128-lane axis, padded to a
    # whole number of tiles (padded columns are sliced away afterwards).
    # TODO(synk): keep x pre-transposed (F, B) upstream to skip this relayout pass.
    x_fm = jnp.zeros((F, b_pad), x.dtype).at[:, :B].set(x.T)

    grid = (b_pad // tm,)
    bytes_accessed = 4 * (
        x_fm.size + b_pad + w1p.size + b1p.size + w2p.size + b2p.size
        + w3p.size + b3p.size
    )

    out = pl.pallas_call(
        _fnn_kernel,
        out_shape=jax.ShapeDtypeStruct((1, b_pad), x.dtype),
        grid_spec=pltpu.PrefetchScalarGridSpec(
            num_scalar_prefetch=0,
            grid=grid,
            in_specs=[
                pl.BlockSpec((F, tm), lambda i: (0, i)),       # x tile, streamed
                pl.BlockSpec((hp1, F), lambda i: (0, 0)),      # weights resident
                pl.BlockSpec((hp1, 1), lambda i: (0, 0)),
                pl.BlockSpec((hp2, hp1), lambda i: (0, 0)),
                pl.BlockSpec((hp2, 1), lambda i: (0, 0)),
                pl.BlockSpec((1, hp2), lambda i: (0, 0)),
                pl.BlockSpec((1, 1), lambda i: (0, 0)),
            ],
            out_specs=pl.BlockSpec((1, tm), lambda i: (0, i)),  # lane-dense out tile
        ),
        compiler_params=pltpu.CompilerParams(
            dimension_semantics=("parallel",),        # shard batch tiles across TCs (v7x)
            vmem_limit_bytes=32 * 1024 * 1024,
        ),
        cost_estimate=pl.CostEstimate(
            flops=2 * b_pad * (F * hp1 + hp1 * hp2 + hp2),
            transcendentals=b_pad * (hp1 + hp2),      # one tanh per hidden element
            bytes_accessed=int(bytes_accessed),
        ),
    )(x_fm, w1p, b1p, w2p, b2p, w3p, b3p)

    return out[0, :B].reshape(B, 1)


def fnn_reference(x, params):
    w1, b1, w2, b2, w3, b3 = params
    h1 = jax.nn.sigmoid(x @ w1.T + b1)
    h2 = jax.nn.sigmoid(h1 @ w2.T + b2)
    return h2 @ w3.T + b3


if __name__ == "__main__":
    key = jax.random.PRNGKey(0)
    k_x, k_x2, k_p = jax.random.split(key, 3)

    HN1, HN2 = 32, 32
    params = init_params(k_p, HN1, HN2)
    prepared = prepare_params(params)

    # Small batch: adaptive tm -> a single 128-wide tile (no 512-wide waste).
    B = 8
    x = jax.random.normal(k_x, (B, 4), dtype=jnp.float32)
    out = jax.block_until_ready(fnn_forward(x, prepared))
    ref = fnn_reference(x, params)
    assert out.shape == (B, 1)
    assert jnp.allclose(out, ref, atol=1e-5, rtol=1e-5)

    # Larger, tile-unaligned batch: adaptive tm gives a 2-step grid (both
    # TensorCores on v7x) and exercises the padding / slicing path.
    B2 = 1000
    x2 = jax.random.normal(k_x2, (B2, 4), dtype=jnp.float32)
    out2 = jax.block_until_ready(fnn_forward(x2, prepared))
    ref2 = fnn_reference(x2, params)
    assert out2.shape == (B2, 1)
    assert jnp.allclose(out2, ref2, atol=1e-5, rtol=1e-5)

    print("KERNEL_OK")
</pallas_src>

<mosaic_0001>
module attributes {stable_mosaic.version = 11 : i64} {
  func.func @_fnn_kernel(%arg0: i32, %arg1: memref<4x128xf32, #tpu.memory_space<vmem>>, %arg2: memref<32x4xf32, #tpu.memory_space<vmem>>, %arg3: memref<32x1xf32, #tpu.memory_space<vmem>>, %arg4: memref<32x32xf32, #tpu.memory_space<vmem>>, %arg5: memref<32x1xf32, #tpu.memory_space<vmem>>, %arg6: memref<1x32xf32, #tpu.memory_space<vmem>>, %arg7: memref<1x1xf32, #tpu.memory_space<vmem>>, %arg8: memref<1x128xf32, #tpu.memory_space<vmem>>) attributes {dimension_semantics = [#tpu.dimension_semantics<parallel>], iteration_bounds = array<i64: 1>, scalar_prefetch = 0 : i64, scratch_operands = 0 : i64, tpu.core_type = #tpu.core_type<tc>, window_params = [{transform_indices = @transform_0, window_bounds = array<i64: 4, 128>}, {pipeline_mode = #tpu.pipeline_mode<synchronous>, transform_indices = @transform_1, window_bounds = array<i64: 32, 4>}, {pipeline_mode = #tpu.pipeline_mode<synchronous>, transform_indices = @transform_2, window_bounds = array<i64: 32, 1>}, {pipeline_mode = #tpu.pipeline_mode<synchronous>, transform_indices = @transform_3, window_bounds = array<i64: 32, 32>}, {pipeline_mode = #tpu.pipeline_mode<synchronous>, transform_indices = @transform_4, window_bounds = array<i64: 32, 1>}, {pipeline_mode = #tpu.pipeline_mode<synchronous>, transform_indices = @transform_5, window_bounds = array<i64: 1, 32>}, {pipeline_mode = #tpu.pipeline_mode<synchronous>, transform_indices = @transform_6, window_bounds = array<i64: 1, 1>}, {transform_indices = @transform_7, window_bounds = array<i64: 1, 128>}]} {
    %c0 = arith.constant 0 : index
    %c0_0 = arith.constant 0 : index
    %0 = vector.load %arg1[%c0, %c0_0] : memref<4x128xf32, #tpu.memory_space<vmem>>, vector<4x128xf32>
    %c0_1 = arith.constant 0 : index
    %c0_2 = arith.constant 0 : index
    %1 = vector.load %arg2[%c0_1, %c0_2] : memref<32x4xf32, #tpu.memory_space<vmem>>, vector<32x4xf32>
    %cst = arith.constant dense<0.000000e+00> : vector<32x128xf32>
    %2 = tpu.matmul %1, %0, %cst {dimension_numbers = #tpu.dot_dimension_numbers<[1], [0], [0], [1], [0, 0, 1, 1], [], []>} : vector<32x4xf32>, vector<4x128xf32>, vector<32x128xf32> -> vector<32x128xf32>
    %c0_3 = arith.constant 0 : index
    %c0_4 = arith.constant 0 : index
    %3 = vector.load %arg3[%c0_3, %c0_4] : memref<32x1xf32, #tpu.memory_space<vmem>>, vector<32x1xf32>
    %4 = vector.broadcast %3 : vector<32x1xf32> to vector<32x128xf32>
    %5 = arith.addf %2, %4 : vector<32x128xf32>
    %cst_5 = arith.constant 5.000000e-01 : f32
    %6 = vector.broadcast %cst_5 : f32 to vector<32x128xf32>
    %7 = arith.mulf %6, %5 : vector<32x128xf32>
    %8 = math.tanh %7 : vector<32x128xf32>
    %cst_6 = arith.constant 1.000000e+00 : f32
    %9 = vector.broadcast %cst_6 : f32 to vector<32x128xf32>
    %10 = arith.addf %8, %9 : vector<32x128xf32>
    %cst_7 = arith.constant 5.000000e-01 : f32
    %11 = vector.broadcast %cst_7 : f32 to vector<32x128xf32>
    %12 = arith.mulf %11, %10 : vector<32x128xf32>
    %c0_8 = arith.constant 0 : index
    %c0_9 = arith.constant 0 : index
    %13 = vector.load %arg4[%c0_8, %c0_9] : memref<32x32xf32, #tpu.memory_space<vmem>>, vector<32x32xf32>
    %cst_10 = arith.constant dense<0.000000e+00> : vector<32x128xf32>
    %14 = tpu.matmul %13, %12, %cst_10 {dimension_numbers = #tpu.dot_dimension_numbers<[1], [0], [0], [1], [0, 0, 1, 1], [], []>} : vector<32x32xf32>, vector<32x128xf32>, vector<32x128xf32> -> vector<32x128xf32>
    %c0_11 = arith.constant 0 : index
    %c0_12 = arith.constant 0 : index
    %15 = vector.load %arg5[%c0_11, %c0_12] : memref<32x1xf32, #tpu.memory_space<vmem>>, vector<32x1xf32>
    %16 = vector.broadcast %15 : vector<32x1xf32> to vector<32x128xf32>
    %17 = arith.addf %14, %16 : vector<32x128xf32>
    %cst_13 = arith.constant 5.000000e-01 : f32
    %18 = vector.broadcast %cst_13 : f32 to vector<32x128xf32>
    %19 = arith.mulf %18, %17 : vector<32x128xf32>
    %20 = math.tanh %19 : vector<32x128xf32>
    %cst_14 = arith.constant 1.000000e+00 : f32
    %21 = vector.broadcast %cst_14 : f32 to vector<32x128xf32>
    %22 = arith.addf %20, %21 : vector<32x128xf32>
    %cst_15 = arith.constant 5.000000e-01 : f32
    %23 = vector.broadcast %cst_15 : f32 to vector<32x128xf32>
    %24 = arith.mulf %23, %22 : vector<32x128xf32>
    %c0_16 = arith.constant 0 : index
    %c0_17 = arith.constant 0 : index
    %25 = vector.load %arg6[%c0_16, %c0_17] : memref<1x32xf32, #tpu.memory_space<vmem>>, vector<1x32xf32>
    %cst_18 = arith.constant dense<0.000000e+00> : vector<1x128xf32>
    %26 = tpu.matmul %25, %24, %cst_18 {dimension_numbers = #tpu.dot_dimension_numbers<[1], [0], [0], [1], [0, 0, 1, 1], [], []>} : vector<1x32xf32>, vector<32x128xf32>, vector<1x128xf32> -> vector<1x128xf32>
    %c0_19 = arith.constant 0 : index
    %c0_20 = arith.constant 0 : index
    %27 = vector.load %arg7[%c0_19, %c0_20] : memref<1x1xf32, #tpu.memory_space<vmem>>, vector<1x1xf32>
    %28 = vector.broadcast %27 : vector<1x1xf32> to vector<1x128xf32>
    %29 = arith.addf %26, %28 : vector<1x128xf32>
    %c0_21 = arith.constant 0 : index
    %c0_22 = arith.constant 0 : index
    %30 = vector.load %arg8[%c0_21, %c0_22] : memref<1x128xf32, #tpu.memory_space<vmem>>, vector<1x128xf32>
    tpu.vector_store %arg8[%c0_21, %c0_22], %29 {strides = array<i32>} : memref<1x128xf32, #tpu.memory_space<vmem>>, vector<1x128xf32>,
    return
  }
  func.func @transform_0(%arg0: i32) -> (i32, i32) {
    %c0_i32 = arith.constant 0 : i32
    %c0_i32_0 = arith.constant 0 : i32
    return %c0_i32, %arg0 : i32, i32
  }
  func.func @transform_1(%arg0: i32) -> (i32, i32) {
    %c0_i32 = arith.constant 0 : i32
    %c0_i32_0 = arith.constant 0 : i32
    %c0_i32_1 = arith.constant 0 : i32
    return %c0_i32, %c0_i32_0 : i32, i32
  }
  func.func @transform_2(%arg0: i32) -> (i32, i32) {
    %c0_i32 = arith.constant 0 : i32
    %c0_i32_0 = arith.constant 0 : i32
    %c0_i32_1 = arith.constant 0 : i32
    return %c0_i32, %c0_i32_0 : i32, i32
  }
  func.func @transform_3(%arg0: i32) -> (i32, i32) {
    %c0_i32 = arith.constant 0 : i32
    %c0_i32_0 = arith.constant 0 : i32
    %c0_i32_1 = arith.constant 0 : i32
    return %c0_i32, %c0_i32_0 : i32, i32
  }
  func.func @transform_4(%arg0: i32) -> (i32, i32) {
    %c0_i32 = arith.constant 0 : i32
    %c0_i32_0 = arith.constant 0 : i32
    %c0_i32_1 = arith.constant 0 : i32
    return %c0_i32, %c0_i32_0 : i32, i32
  }
  func.func @transform_5(%arg0: i32) -> (i32, i32) {
    %c0_i32 = arith.constant 0 : i32
    %c0_i32_0 = arith.constant 0 : i32
    %c0_i32_1 = arith.constant 0 : i32
    return %c0_i32, %c0_i32_0 : i32, i32
  }
  func.func @transform_6(%arg0: i32) -> (i32, i32) {
    %c0_i32 = arith.constant 0 : i32
    %c0_i32_0 = arith.constant 0 : i32
    %c0_i32_1 = arith.constant 0 : i32
    return %c0_i32, %c0_i32_0 : i32, i32
  }
  func.func @transform_7(%arg0: i32) -> (i32, i32) {
    %c0_i32 = arith.constant 0 : i32
    %c0_i32_0 = arith.constant 0 : i32
    return %c0_i32, %arg0 : i32, i32
  }
}

</mosaic_0001>

<llo_original>
// kernel: tpu_custom_call.1
$region0: #{tpu_custom_call.1}
  #allocation0 [shape = 'u32[]', space=smem, size = 0x4, offset = 0x4, fixed_abs, tag = 'smem constant byte address 0x4 - core index']
  #allocation1 [shape = 'u32[144,128]{1,0:T(1,128)}', space=vmem, size = 0x12000, scoped, tag = 'internal scratch']
  #allocation2 [shape = 'f32[1,1]{1,0:T(1,128)S(1)}', space=vmem, size = 0x200, scoped, tag = 'scoped memory for tpu_custom_call.1']
  %s0 = inlined_call_operand.vmem [shape: f32[4,128], index: 0, kind: input, shape index: {}]
  %s1 = inlined_call_operand.vmem [shape: f32[32,4], index: 1, kind: input, shape index: {}]
  %s2 = inlined_call_operand.vmem [shape: f32[32,1], index: 2, kind: input, shape index: {}]
  %s3 = inlined_call_operand.vmem [shape: f32[32,32], index: 3, kind: input, shape index: {}]
  %s4 = inlined_call_operand.vmem [shape: f32[32,1], index: 4, kind: input, shape index: {}]
  %s5 = inlined_call_operand.vmem [shape: f32[1,32], index: 5, kind: input, shape index: {}]
  %s6 = inlined_call_operand.<no memory space> [shape: f32[1,1], index: 6, kind: input, shape index: {}]
  %s7 = inlined_call_operand.hbm [shape: f32[1,128], index: 7, kind: output, shape index: {}]
  %s8 = sld [smem:[#allocation0]]
  $region38: #{tpu_custom_call.1} parent=0
    _
  %s10 = ssub.s32 1, %s8
  %s11 = scalar_select 0, %s10, %s8
  %v12 = vstv %s6
  %13 = vst [vmem:[#allocation2] sm:$0x1] %v12
  $region1: #{tpu_custom_call.1} parent=0
    #allocation3 [shape = 'u8[512]{0}', space=vmem, size = 0x400, scoped, tag = 'output window, operand 0, single buffered']
    #allocation4 [shape = 's32[1]{0}', space=sflag, size = 0x4, scoped, tag = 'scoped memory for tpu_custom_call.1']
    %14 = vsyncpa [#allocation4], 0
    // Predicated region
    $region2: #{tpu_custom_call.1} parent=1 // pred_check
      _
    $region3: #{tpu_custom_call.1} parent=1 // pred_check_branch
      %16 = sbr.rel (0) target = $region5
    $region4: #{tpu_custom_call.1} parent=1 // pred_region
      _
    $region5: #{tpu_custom_call.1} parent=1 // pred_fallthru
      _
    // Predicated region
    $region6: #{tpu_custom_call.1} parent=1 // pred_check
      _
    $region7: #{tpu_custom_call.1} parent=1 // pred_check_branch
      %18 = sbr.rel (0) target = $region9
    $region8: #{tpu_custom_call.1} parent=1 // pred_region
      _
    $region9: #{tpu_custom_call.1} parent=1 // pred_fallthru
      _
    // Predicated region
    $region10: #{tpu_custom_call.1} parent=1 // pred_check
      _
    $region11: #{tpu_custom_call.1} parent=1 // pred_check_branch
      %20 = sbr.rel (0) target = $region13
    $region12: #{tpu_custom_call.1} parent=1 // pred_region
      _
    $region13: #{tpu_custom_call.1} parent=1 // pred_fallthru
      _
    // Predicated region
    $region14: #{tpu_custom_call.1} parent=1 // pred_check
      _
    $region15: #{tpu_custom_call.1} parent=1 // pred_check_branch
      %22 = sbr.rel (0) target = $region17
    $region16: #{tpu_custom_call.1} parent=1 // pred_region
      _
    $region17: #{tpu_custom_call.1} parent=1 // pred_fallthru
      _
    // Predicated region
    $region18: #{tpu_custom_call.1} parent=1 // pred_check
      _
    $region19: #{tpu_custom_call.1} parent=1 // pred_check_branch
      %24 = sbr.rel (0) target = $region21
    $region20: #{tpu_custom_call.1} parent=1 // pred_region
      _
    $region21: #{tpu_custom_call.1} parent=1 // pred_fallthru
      _
    // Predicated region
    $region22: #{tpu_custom_call.1} parent=1 // pred_check
      _
    $region23: #{tpu_custom_call.1} parent=1 // pred_check_branch
      %26 = sbr.rel (0) target = $region25
    $region24: #{tpu_custom_call.1} parent=1 // pred_region
      _
    $region25: #{tpu_custom_call.1} parent=1 // pred_fallthru
      _
    // Predicated region
    $region26: #{tpu_custom_call.1} parent=1 // pred_check
      _
    $region27: #{tpu_custom_call.1} parent=1 // pred_check_branch
      %28 = sbr.rel (0) target = $region29
    $region28: #{tpu_custom_call.1} parent=1 // pred_region
      _
    $region29: #{tpu_custom_call.1} parent=1 // pred_fallthru
      _
    %v29 = vld [vmem:[%s0] sm:$0xf]
    %v30 = vld [vmem:[%s1] sm:$0xff]
    %v31 = vld [vmem:[%s1 + $0x8] sm:$0xff]
    %v32 = vld [vmem:[%s1 + $0x10] sm:$0xff]
    %v33 = vld [vmem:[%s1 + $0x18] sm:$0xff]
    %v34 = vld [vmem:[%s2] sm:$0xff]
    %v35 = vld [vmem:[%s2 + $0x8] sm:$0xff]
    %v36 = vld [vmem:[%s2 + $0x10] sm:$0xff]
    %v37 = vld [vmem:[%s2 + $0x18] sm:$0xff]
    %39 = vset.pattern.permute.xlu0 0
    %40 = vperm.xlu0 %39, %v34
    %v41 = vpop.permute.xlu0 %40
    %44 = vset.pattern.permute.xlu0 0
    %45 = vperm.xlu0 %44, %v35
    %v46 = vpop.permute.xlu0 %45
    %49 = vset.pattern.permute.xlu0 0
    %50 = vperm.xlu0 %49, %v36
    %v51 = vpop.permute.xlu0 %50
    %54 = vset.pattern.permute.xlu0 0
    %55 = vperm.xlu0 %54, %v37
    %v56 = vpop.permute.xlu0 %55
    %vm58 = vcmask 31744
    %v60 = vsel %vm58, %v30, 0
    %v63 = vsel %vm58, %v31, 0
    %v66 = vsel %vm58, %v32, 0
    %v69 = vsel %vm58, %v33, 0
    %vm71 = vcmask 1043456
    %v73 = vsel %vm71, %v29, 0
    %75 = vmatprep.subr.mxu0 0.0
    %76 = vmatpush1.msra.mxu0 %v73
    %77 = vmatprep.subr.mxu0 0.0
    %78 = vmatpush1.msra.mxu0 0.0
    %79 = vmatprep.subr.mxu0 0.0
    %80 = vmatpush1.msra.mxu0 0.0
    %81 = vmatprep.subr.mxu0 0.0
    %82 = vmatpush1.msra.mxu0 0.0
    %83 = vmatprep.subr.mxu0 0.0
    %84 = vmatpush1.msra.mxu0 0.0
    %85 = vmatprep.subr.mxu0 0.0
    %86 = vmatpush1.msra.mxu0 0.0
    %87 = vmatprep.subr.mxu0 0.0
    %88 = vmatpush1.msra.mxu0 0.0
    %89 = vmatprep.subr.mxu0 0.0
    %90 = vmatpush1.msra.mxu0 0.0
    %91 = vmatprep.subr.mxu0 0.0
    %92 = vmatpush1.msra.mxu0 0.0
    %93 = vmatprep.subr.mxu0 0.0
    %94 = vmatpush1.msra.mxu0 0.0
    %95 = vmatprep.subr.mxu0 0.0
    %96 = vmatpush1.msra.mxu0 0.0
    %97 = vmatprep.subr.mxu0 0.0
    %98 = vmatpush1.msra.mxu0 0.0
    %99 = vmatprep.subr.mxu0 0.0
    %100 = vmatpush1.msra.mxu0 0.0
    %101 = vmatprep.subr.mxu0 0.0
    %102 = vmatpush1.msra.mxu0 0.0
    %103 = vmatprep.subr.mxu0 0.0
    %104 = vmatpush1.msra.mxu0 0.0
    %105 = vmatprep.subr.mxu0 0.0
    %106 = vmatpush1.msra.mxu0 0.0
    %107 = vmatprep.subr.mxu0 0.0
    %108 = vmatpush1.msra.mxu0 0.0
    %109 = vmatprep.subr.mxu0 0.0
    %110 = vmatpush1.msra.mxu0 0.0
    %111 = vmatprep.subr.mxu0 0.0
    %112 = vmatpush1.msra.mxu0 0.0
    %113 = vmatprep.subr.mxu0 0.0
    %114 = vmatpush1.msra.mxu0 0.0
    %115 = vmatprep.subr.mxu0 0.0
    %116 = vmatpush1.msra.mxu0 0.0
    %117 = vmatprep.subr.mxu0 0.0
    %118 = vmatpush1.msra.mxu0 0.0
    %119 = vmatprep.subr.mxu0 0.0
    %120 = vmatpush1.msra.mxu0 0.0
    %121 = vmatprep.subr.mxu0 0.0
    %122 = vmatpush1.msra.mxu0 0.0
    %123 = vmatprep.subr.mxu0 0.0
    %124 = vmatpush1.msra.mxu0 0.0
    %125 = vmatprep.subr.mxu0 0.0
    %126 = vmatpush1.msra.mxu0 0.0
    %127 = vmatprep.subr.mxu0 0.0
    %128 = vmatpush1.msra.mxu0 0.0
    %129 = vmatprep.subr.mxu0 0.0
    %130 = vmatpush1.msra.mxu0 0.0
    %131 = vmatprep.subr.mxu0 0.0
    %132 = vmatpush1.msra.mxu0 0.0
    %133 = vmatprep.subr.mxu0 0.0
    %134 = vmatpush1.msra.mxu0 0.0
    %135 = vmatprep.subr.mxu0 0.0
    %136 = vmatpush1.msra.mxu0 0.0
    %137 = vmatprep.subr.mxu0 0.0
    %138 = vmatpush1.msra.mxu0 0.0
    %139 = vmatprep.mubr.f32.mxu0 0.0
    %140 = vmatmul.mubr.f32.gmra.mrb[0].mxu0 %v60
    %v141 = vpop.f32.mrb[0].mxu0
    %v142 = vadd.f32 %v41, %v141
    %v143 = vpop.f32.mrb[0].mxu0
    %144 = vmatprep.mubr.f32.mxu0 0.0
    %145 = vmatmul.mubr.f32.gmra.mrb[0].mxu0 %v63
    %v146 = vpop.f32.mrb[0].mxu0
    %v147 = vadd.f32 %v46, %v146
    %v148 = vpop.f32.mrb[0].mxu0
    %149 = vmatprep.mubr.f32.mxu0 0.0
    %150 = vmatmul.mubr.f32.gmra.mrb[0].mxu0 %v66
    %v151 = vpop.f32.mrb[0].mxu0
    %v152 = vadd.f32 %v51, %v151
    %v153 = vpop.f32.mrb[0].mxu0
    %154 = vmatprep.mubr.f32.mxu0 0.0
    %155 = vmatmul.mubr.f32.gmra.mrb[0].mxu0 %v69
    %v156 = vpop.f32.mrb[0].mxu0
    %v157 = vadd.f32 %v56, %v156
    %v158 = vpop.f32.mrb[0].mxu0
    %159 = vdwg.mxu0
    %v160 = vmul.f32 %v142, 0.5
    %v161 = vmul.f32 %v147, 0.5
    %v162 = vmul.f32 %v152, 0.5
    %v163 = vmul.f32 %v157, 0.5
    %v164 = vtanh.pop %v160
    %v165 = vtanh.pop %v161
    %v166 = vtanh.pop %v162
    %v167 = vtanh.pop %v163
    %v168 = vadd.f32 %v164, 1.0
    %v169 = vadd.f32 %v165, 1.0
    %v170 = vadd.f32 %v166, 1.0
    %v171 = vadd.f32 %v167, 1.0
    %v172 = vmul.f32 %v168, 0.5
    %v173 = vmul.f32 %v169, 0.5
    %v174 = vmul.f32 %v170, 0.5
    %v175 = vmul.f32 %v171, 0.5
    %v176 = vld [vmem:[%s3] sm:$0xff]
    %v177 = vld [vmem:[%s3 + $0x8] sm:$0xff]
    %v178 = vld [vmem:[%s3 + $0x10] sm:$0xff]
    %v179 = vld [vmem:[%s3 + $0x18] sm:$0xff]
    %v180 = vld [vmem:[%s4] sm:$0xff]
    %v181 = vld [vmem:[%s4 + $0x8] sm:$0xff]
    %v182 = vld [vmem:[%s4 + $0x10] sm:$0xff]
    %v183 = vld [vmem:[%s4 + $0x18] sm:$0xff]
    %185 = vset.pattern.permute.xlu0 0
    %186 = vperm.xlu0 %185, %v180
    %v187 = vpop.permute.xlu0 %186
    %190 = vset.pattern.permute.xlu0 0
    %191 = vperm.xlu0 %190, %v181
    %v192 = vpop.permute.xlu0 %191
    %195 = vset.pattern.permute.xlu0 0
    %196 = vperm.xlu0 %195, %v182
    %v197 = vpop.permute.xlu0 %196
    %200 = vset.pattern.permute.xlu0 0
    %201 = vperm.xlu0 %200, %v183
    %v202 = vpop.permute.xlu0 %201
    %vm204 = vcmask 261120
    %v206 = vsel %vm204, %v176, 0
    %v209 = vsel %vm204, %v177, 0
    %v212 = vsel %vm204, %v178, 0
    %v215 = vsel %vm204, %v179, 0
    %217 = vmatprep.subr.mxu0 0.0
    %218 = vmatpush1.msra.mxu0 %v172
    %219 = vmatprep.subr.mxu0 0.0
    %220 = vmatpush1.msra.mxu0 %v173
    %221 = vmatprep.subr.mxu0 0.0
    %222 = vmatpush1.msra.mxu0 %v174
    %223 = vmatprep.subr.mxu0 0.0
    %224 = vmatpush1.msra.mxu0 %v175
    %225 = vmatprep.subr.mxu0 0.0
    %226 = vmatpush1.msra.mxu0 0.0
    %227 = vmatprep.subr.mxu0 0.0
    %228 = vmatpush1.msra.mxu0 0.0
    %229 = vmatprep.subr.mxu0 0.0
    %230 = vmatpush1.msra.mxu0 0.0
    %231 = vmatprep.subr.mxu0 0.0
    %232 = vmatpush1.msra.mxu0 0.0
    %233 = vmatprep.subr.mxu0 0.0
    %234 = vmatpush1.msra.mxu0 0.0
    %235 = vmatprep.subr.mxu0 0.0
    %236 = vmatpush1.msra.mxu0 0.0
    %237 = vmatprep.subr.mxu0 0.0
    %238 = vmatpush1.msra.mxu0 0.0
    %239 = vmatprep.subr.mxu0 0.0
    %240 = vmatpush1.msra.mxu0 0.0
    %241 = vmatprep.subr.mxu0 0.0
    %242 = vmatpush1.msra.mxu0 0.0
    %243 = vmatprep.subr.mxu0 0.0
    %244 = vmatpush1.msra.mxu0 0.0
    %245 = vmatprep.subr.mxu0 0.0
    %246 = vmatpush1.msra.mxu0 0.0
    %247 = vmatprep.subr.mxu0 0.0
    %248 = vmatpush1.msra.mxu0 0.0
    %249 = vmatprep.subr.mxu0 0.0
    %250 = vmatpush1.msra.mxu0 0.0
    %251 = vmatprep.subr.mxu0 0.0
    %252 = vmatpush1.msra.mxu0 0.0
    %253 = vmatprep.subr.mxu0 0.0
    %254 = vmatpush1.msra.mxu0 0.0
    %255 = vmatprep.subr.mxu0 0.0
    %256 = vmatpush1.msra.mxu0 0.0
    %257 = vmatprep.subr.mxu0 0.0
    %258 = vmatpush1.msra.mxu0 0.0
    %259 = vmatprep.subr.mxu0 0.0
    %260 = vmatpush1.msra.mxu0 0.0
    %261 = vmatprep.subr.mxu0 0.0
    %262 = vmatpush1.msra.mxu0 0.0
    %263 = vmatprep.subr.mxu0 0.0
    %264 = vmatpush1.msra.mxu0 0.0
    %265 = vmatprep.subr.mxu0 0.0
    %266 = vmatpush1.msra.mxu0 0.0
    %267 = vmatprep.subr.mxu0 0.0
    %268 = vmatpush1.msra.mxu0 0.0
    %269 = vmatprep.subr.mxu0 0.0
    %270 = vmatpush1.msra.mxu0 0.0
    %271 = vmatprep.subr.mxu0 0.0
    %272 = vmatpush1.msra.mxu0 0.0
    %273 = vmatprep.subr.mxu0 0.0
    %274 = vmatpush1.msra.mxu0 0.0
    %275 = vmatprep.subr.mxu0 0.0
    %276 = vmatpush1.msra.mxu0 0.0
    %277 = vmatprep.subr.mxu0 0.0
    %278 = vmatpush1.msra.mxu0 0.0
    %279 = vmatprep.subr.mxu0 0.0
    %280 = vmatpush1.msra.mxu0 0.0
    %281 = vmatprep.mubr.f32.mxu0 0.0
    %282 = vmatmul.mubr.f32.gmra.mrb[0].mxu0 %v206
    %v283 = vpop.f32.mrb[0].mxu0
    %v284 = vadd.f32 %v187, %v283
    %v285 = vpop.f32.mrb[0].mxu0
    %286 = vmatprep.mubr.f32.mxu0 0.0
    %287 = vmatmul.mubr.f32.gmra.mrb[0].mxu0 %v209
    %v288 = vpop.f32.mrb[0].mxu0
    %v289 = vadd.f32 %v192, %v288
    %v290 = vpop.f32.mrb[0].mxu0
    %291 = vmatprep.mubr.f32.mxu0 0.0
    %292 = vmatmul.mubr.f32.gmra.mrb[0].mxu0 %v212
    %v293 = vpop.f32.mrb[0].mxu0
    %v294 = vadd.f32 %v197, %v293
    %v295 = vpop.f32.mrb[0].mxu0
    %296 = vmatprep.mubr.f32.mxu0 0.0
    %297 = vmatmul.mubr.f32.gmra.mrb[0].mxu0 %v215
    %v298 = vpop.f32.mrb[0].mxu0
    %v299 = vadd.f32 %v202, %v298
    %v300 = vpop.f32.mrb[0].mxu0
    %301 = vdwg.mxu0
    %v302 = vmul.f32 %v284, 0.5
    %v303 = vmul.f32 %v289, 0.5
    %v304 = vmul.f32 %v294, 0.5
    %v305 = vmul.f32 %v299, 0.5
    %v306 = vtanh.pop %v302
    %v307 = vtanh.pop %v303
    %v308 = vtanh.pop %v304
    %v309 = vtanh.pop %v305
    %v310 = vadd.f32 %v306, 1.0
    %v311 = vadd.f32 %v307, 1.0
    %v312 = vadd.f32 %v308, 1.0
    %v313 = vadd.f32 %v309, 1.0
    %v314 = vmul.f32 %v310, 0.5
    %v315 = vmul.f32 %v311, 0.5
    %v316 = vmul.f32 %v312, 0.5
    %v317 = vmul.f32 %v313, 0.5
    %v318 = vld [vmem:[%s5] sm:$0x1]
    %v319 = vld [vmem:[#allocation2] sm:$0x1]
    %321 = vset.pattern.permute.xlu0 0
    %322 = vperm.xlu0 %321, %v319
    %v323 = vpop.permute.xlu0 %322
    %v325 = vlaneseq
    %v326 = vshrl.u32 %v325, 7
    %v327 = vsub.s32 0, %v326
    %v328 = vrot.slane %v323, %v327
    %v330 = vsel %vm204, %v318, 0
    %332 = vmatprep.subr.mxu0 0.0
    %333 = vmatpush1.msra.mxu0 %v314
    %334 = vmatprep.subr.mxu0 0.0
    %335 = vmatpush1.msra.mxu0 %v315
    %336 = vmatprep.subr.mxu0 0.0
    %337 = vmatpush1.msra.mxu0 %v316
    %338 = vmatprep.subr.mxu0 0.0
    %339 = vmatpush1.msra.mxu0 %v317
    %340 = vmatprep.subr.mxu0 0.0
    %341 = vmatpush1.msra.mxu0 0.0
    %342 = vmatprep.subr.mxu0 0.0
    %343 = vmatpush1.msra.mxu0 0.0
    %344 = vmatprep.subr.mxu0 0.0
    %345 = vmatpush1.msra.mxu0 0.0
    %346 = vmatprep.subr.mxu0 0.0
    %347 = vmatpush1.msra.mxu0 0.0
    %348 = vmatprep.subr.mxu0 0.0
    %349 = vmatpush1.msra.mxu0 0.0
    %350 = vmatprep.subr.mxu0 0.0
    %351 = vmatpush1.msra.mxu0 0.0
    %352 = vmatprep.subr.mxu0 0.0
    %353 = vmatpush1.msra.mxu0 0.0
    %354 = vmatprep.subr.mxu0 0.0
    %355 = vmatpush1.msra.mxu0 0.0
    %356 = vmatprep.subr.mxu0 0.0
    %357 = vmatpush1.msra.mxu0 0.0
    %358 = vmatprep.subr.mxu0 0.0
    %359 = vmatpush1.msra.mxu0 0.0
    %360 = vmatprep.subr.mxu0 0.0
    %361 = vmatpush1.msra.mxu0 0.0
    %362 = vmatprep.subr.mxu0 0.0
    %363 = vmatpush1.msra.mxu0 0.0
    %364 = vmatprep.subr.mxu0 0.0
    %365 = vmatpush1.msra.mxu0 0.0
    %366 = vmatprep.subr.mxu0 0.0
    %367 = vmatpush1.msra.mxu0 0.0
    %368 = vmatprep.subr.mxu0 0.0
    %369 = vmatpush1.msra.mxu0 0.0
    %370 = vmatprep.subr.mxu0 0.0
    %371 = vmatpush1.msra.mxu0 0.0
    %372 = vmatprep.subr.mxu0 0.0
    %373 = vmatpush1.msra.mxu0 0.0
    %374 = vmatprep.subr.mxu0 0.0
    %375 = vmatpush1.msra.mxu0 0.0
    %376 = vmatprep.subr.mxu0 0.0
    %377 = vmatpush1.msra.mxu0 0.0
    %378 = vmatprep.subr.mxu0 0.0
    %379 = vmatpush1.msra.mxu0 0.0
    %380 = vmatprep.subr.mxu0 0.0
    %381 = vmatpush1.msra.mxu0 0.0
    %382 = vmatprep.subr.mxu0 0.0
    %383 = vmatpush1.msra.mxu0 0.0
    %384 = vmatprep.subr.mxu0 0.0
    %385 = vmatpush1.msra.mxu0 0.0
    %386 = vmatprep.subr.mxu0 0.0
    %387 = vmatpush1.msra.mxu0 0.0
    %388 = vmatprep.subr.mxu0 0.0
    %389 = vmatpush1.msra.mxu0 0.0
    %390 = vmatprep.subr.mxu0 0.0
    %391 = vmatpush1.msra.mxu0 0.0
    %392 = vmatprep.subr.mxu0 0.0
    %393 = vmatpush1.msra.mxu0 0.0
    %394 = vmatprep.subr.mxu0 0.0
    %395 = vmatpush1.msra.mxu0 0.0
    %396 = vmatprep.mubr.f32.mxu0 0.0
    %397 = vmatmul.mubr.f32.gmra.mrb[0].mxu0 %v330
    %v398 = vpop.f32.mrb[0].mxu0
    %v399 = vadd.f32 %v328, %v398
    %v400 = vpop.f32.mrb[0].mxu0
    %401 = vdwg.mxu0
    %402 = vst [vmem:[#allocation3] sm:$0x1] %v399
    // Predicated region
    $region30: #{tpu_custom_call.1} parent=1 // pred_check
      _
    $region31: #{tpu_custom_call.1} parent=1 // pred_check_branch
      %404 = sbr.rel (0) target = $region33
    $region32: #{tpu_custom_call.1} parent=1 // pred_region
      %s406 = ssub.s32 16, 16
      %407 = vsyncadd [#allocation4], %s406
      %s409 = sshll.u32 [#allocation3], 4
      %s410 = int_to_ptr.vmem [resolvable:$true] %s409
      %412 = dma.vmem_to_hbm [thread:$0]  %s410, 16, %s7, [#allocation4]
    $region33: #{tpu_custom_call.1} parent=1 // pred_fallthru
      _
    // Predicated region
    $region34: #{tpu_custom_call.1} parent=1 // pred_check
      _
    $region35: #{tpu_custom_call.1} parent=1 // pred_check_branch
      %414 = sbr.rel (0) target = $region37
    $region36: #{tpu_custom_call.1} parent=1 // pred_region
      %415 = dma.done [#allocation4], 16
    $region37: #{tpu_custom_call.1} parent=1 // pred_fallthru
      _
    %416 = vsyncpa [#allocation4], 1

</llo_original>
